<compile_context>
chip_gen: v7x
topology: tpu7x:2x2x1
jax: 0.10.0
libtpu: 0.0.40
codegen_flags: <defaults>
</compile_context>

<pallas_src>
import math

import jax
import jax.numpy as jnp
from jax.experimental import pallas as pl
from jax.experimental.pallas import tpu as pltpu

_INV_SQRT2 = 1.0 / math.sqrt(2.0)


def _round_up(a, b):
    return ((a + b - 1) // b) * b


def _cdiv(a, b):
    return (a + b - 1) // b


# ----------------------------------------------------------------------------
# Kernels
# ----------------------------------------------------------------------------
def _partial_f32(x_ref, w1_ref, b1_ref, w2_ref):
    """One F-slab of the FFN: (x @ W1_slab + b1_slab) -> GELU -> @ W2_slab (f32)."""
    h = jnp.dot(x_ref[...], w1_ref[...], preferred_element_type=jnp.float32)
    h = h + b1_ref[...].astype(jnp.float32)
    # exact GELU (erf formulation; matches torch.nn.GELU default)
    h = 0.5 * h * (1.0 + jax.lax.erf(h * _INV_SQRT2))
    # cast back to the weight dtype so bf16 weights keep the fast bf16 MXU path
    return jnp.dot(h.astype(w2_ref.dtype), w2_ref[...],
                   preferred_element_type=jnp.float32)


def _ffn_kernel_f32_out(x_ref, w1_ref, b1_ref, w2_ref, b2_ref, o_ref):
    """f32 output: accumulate directly into the resident output block."""
    f = pl.program_id(1)

    @pl.when(f == 0)
    def _():
        o_ref[...] = jnp.zeros_like(o_ref)

    o_ref[...] += _partial_f32(x_ref, w1_ref, b1_ref, w2_ref)

    @pl.when(f == pl.num_programs(1) - 1)
    def _():
        o_ref[...] += b2_ref[...].astype(jnp.float32)


def _ffn_kernel_acc(x_ref, w1_ref, b1_ref, w2_ref, b2_ref, o_ref, acc_ref):
    """Low-precision output: accumulate in f32 scratch, cast on the last F step."""
    f = pl.program_id(1)

    @pl.when(f == 0)
    def _():
        acc_ref[...] = jnp.zeros_like(acc_ref)

    acc_ref[...] += _partial_f32(x_ref, w1_ref, b1_ref, w2_ref)

    @pl.when(f == pl.num_programs(1) - 1)
    def _():
        o_ref[...] = (acc_ref[...] + b2_ref[...].astype(jnp.float32)).astype(o_ref.dtype)


# ----------------------------------------------------------------------------
# Tile / VMEM sizing
# ----------------------------------------------------------------------------
def _vmem_caps():
    """(physical VMEM bytes, vmem_limit_bytes to request)."""
    cap = 64 * 1024 * 1024  # conservative fallback = v7x physical size
    try:
        cap = int(pltpu.get_tpu_info().vmem_capacity_bytes)
    except Exception:
        pass
    # Leave headroom for compiler scratch / semaphores; never request full VMEM.
    limit = min(cap - 12 * 1024 * 1024, int(cap * 0.82))
    limit = max(limit, 16 * 1024 * 1024)
    return cap, limit


def _pick_tm(m, tm_target, granule, want_two_tiles):
    tm_target = max(granule, _round_up(tm_target, granule))
    tm = min(tm_target, _round_up(m, granule))
    if want_two_tiles and _round_up(m, granule) > granule:
        # 2-TensorCore chip (v7x): guarantee >= 2 M tiles so both cores get work.
        tm = min(tm, _round_up(_cdiv(m, 2), granule))
    return max(tm, granule)


def _tf_candidates(ffn, tf_cap):
    """F-tile candidates, descending: whole ffn, then multiple-of-128 exact divisors.
    Exact divisors mean no runtime weight padding is ever needed."""
    divs = [d for d in range(128, ffn, 128) if ffn % d == 0]
    cands = [ffn] + sorted(divs, reverse=True)
    if tf_cap is not None:
        capped = [c for c in cands if c <= tf_cap]
        if capped:
            cands = capped
    return cands


def _vmem_need(tm_e, tf_e, hidden, dx, dw, do, acc_bytes):
    need = 2 * tm_e * hidden * dx          # x tile (double-buffered)
    need += 2 * hidden * tf_e * dw         # W1 F-slab
    need += 2 * tf_e * dw                  # b1 F-slab
    need += 2 * tf_e * hidden * dw         # W2 F-slab
    need += 2 * hidden * dw                # b2
    need += 2 * tm_e * hidden * do         # output tile
    need += tm_e * hidden * acc_bytes      # f32 accumulator scratch (if any)
    return need


# ----------------------------------------------------------------------------
# Wrapper
# ----------------------------------------------------------------------------
def ffn_pallas(x, w1, b1, w2, b2, *, tm=512, tf=None, out_dtype=None):
    """x: (..., hidden). Weights stored [in_features, out_features]. Returns (..., hidden)."""
    orig_shape = x.shape
    hidden = orig_shape[-1]
    ffn = w1.shape[1]
    out_dtype = jnp.dtype(x.dtype if out_dtype is None else out_dtype)

    x2d = x.reshape(-1, hidden)
    m = x2d.shape[0]

    dx = jnp.dtype(x.dtype).itemsize
    dw = jnp.dtype(w1.dtype).itemsize
    do = out_dtype.itemsize
    use_acc = out_dtype != jnp.dtype(jnp.float32)
    acc_bytes = 4 if use_acc else 0

    cap, vmem_limit = _vmem_caps()
    want_two_tiles = cap <= 64 * 1024 * 1024  # v7x heuristic: 64 MiB VMEM, 2 TCs/chip
    budget = int(vmem_limit * 0.9)

    granule = max(8, 32 // dx)  # sublane granule: 8 f32, 16 bf16, 32 int8/fp8
    tm_eff = _pick_tm(m, tm, granule, want_two_tiles)

    # Pick the largest F slab that fits the VMEM budget; shrink tm if necessary.
    # TODO(synk): masked remainder handling for FFN dims that are neither
    # 128-multiples nor VMEM-resident as a whole (pathological sizes).
    cands = _tf_candidates(ffn, tf)
    tf_eff = None
    while tf_eff is None:
        for c in cands:
            if _vmem_need(tm_eff, c, hidden, dx, dw, do, acc_bytes) <= budget:
                tf_eff = c
                break
        if tf_eff is None:
            if tm_eff <= granule:
                tf_eff = cands[-1]  # smallest candidate; accept
            else:
                tm_eff = max(granule, _round_up(tm_eff // 2, granule))

    # Only the token (activation) axis is padded; padded rows are discarded.
    m_pad = _round_up(m, tm_eff)
    if m_pad != m:
        x2d = jnp.pad(x2d, ((0, m_pad - m), (0, 0)))

    b1_2d = b1.reshape(1, ffn)
    b2_2d = b2.reshape(1, hidden)

    grid = (m_pad // tm_eff, ffn // tf_eff)

    in_specs = [
        pl.BlockSpec((tm_eff, hidden), lambda i, f: (i, 0)),   # x tile (same for all F)
        pl.BlockSpec((hidden, tf_eff), lambda i, f: (0, f)),   # W1 F-slab
        pl.BlockSpec((1, tf_eff), lambda i, f: (0, f)),        # b1 F-slab
        pl.BlockSpec((tf_eff, hidden), lambda i, f: (f, 0)),   # W2 F-slab
        pl.BlockSpec((1, hidden), lambda i, f: (0, 0)),        # b2 (full)
    ]
    out_spec = pl.BlockSpec((tm_eff, hidden), lambda i, f: (i, 0))

    kernel = _ffn_kernel_acc if use_acc else _ffn_kernel_f32_out
    scratch = [pltpu.VMEM((tm_eff, hidden), jnp.float32)] if use_acc else []

    out = pl.pallas_call(
        kernel,
        out_shape=jax.ShapeDtypeStruct((m_pad, hidden), out_dtype),
        grid_spec=pltpu.PrefetchScalarGridSpec(
            num_scalar_prefetch=0,
            grid=grid,
            in_specs=in_specs,
            out_specs=out_spec,
            scratch_shapes=scratch,
        ),
        compiler_params=pltpu.CompilerParams(
            dimension_semantics=("parallel", "arbitrary"),
            vmem_limit_bytes=vmem_limit,
        ),
    )(x2d, w1, b1_2d, w2, b2_2d)

    if m_pad != m:
        out = out[:m]
    return out.reshape(orig_shape[:-1] + (hidden,))


# ----------------------------------------------------------------------------
# Reference / init / smoke test
# ----------------------------------------------------------------------------
def init_ffn_params(key, hidden_size, ffn_size, dtype=jnp.float32):
    """Matches torch.nn.Linear default init (uniform +/- 1/sqrt(fan_in)).
    Weights stored transposed relative to torch: [in_features, out_features]."""
    k1, k2, k3, k4 = jax.random.split(key, 4)
    bound1 = 1.0 / math.sqrt(hidden_size)
    bound2 = 1.0 / math.sqrt(ffn_size)
    w1 = jax.random.uniform(k1, (hidden_size, ffn_size), dtype, -bound1, bound1)
    b1 = jax.random.uniform(k2, (ffn_size,), dtype, -bound1, bound1)
    w2 = jax.random.uniform(k3, (ffn_size, hidden_size), dtype, -bound2, bound2)
    b2 = jax.random.uniform(k4, (hidden_size,), dtype, -bound2, bound2)
    return w1, b1, w2, b2


def ffn_reference(x, w1, b1, w2, b2):
    h = x @ w1 + b1
    h = 0.5 * h * (1.0 + jax.lax.erf(h / math.sqrt(2.0)))
    return h @ w2 + b2


if __name__ == "__main__":
    # Note: dropout_rate in the torch module is unused in forward(), so no dropout here.

    # --- Test 1: small f32, whole-ffn slab, direct-to-output accumulation ----
    batch, seq, hidden, ffn = 2, 8, 32, 64
    key = jax.random.PRNGKey(0)
    kx, kp = jax.random.split(key)
    x = jax.random.normal(kx, (batch, seq, hidden), dtype=jnp.float32)
    w1, b1, w2, b2 = init_ffn_params(kp, hidden, ffn)

    out = jax.block_until_ready(ffn_pallas(x, w1, b1, w2, b2))
    ref = ffn_reference(x, w1, b1, w2, b2)
    assert out.shape == x.shape
    assert jnp.allclose(out, ref, atol=1e-5, rtol=1e-5), "mismatch vs reference (test 1)"

    # --- Test 2: f32, F-tiled path, non-divisible token count ----------------
    b2_, s2_, h2_, f2_ = 3, 7, 128, 512
    kx2, kp2 = jax.random.split(jax.random.PRNGKey(1))
    x2 = jax.random.normal(kx2, (b2_, s2_, h2_), dtype=jnp.float32)
    p2 = init_ffn_params(kp2, h2_, f2_)
    out2 = jax.block_until_ready(ffn_pallas(x2, *p2, tf=256))
    ref2 = ffn_reference(x2, *p2)
    assert jnp.allclose(out2, ref2, atol=1e-4, rtol=1e-4), "mismatch vs reference (test 2)"

    # --- Test 3: bf16 weights/activations, f32-scratch accumulator path ------
    b3_, s3_, h3_, f3_ = 2, 16, 128, 256
    kx3, kp3 = jax.random.split(jax.random.PRNGKey(2))
    x3 = jax.random.normal(kx3, (b3_, s3_, h3_), dtype=jnp.bfloat16)
    p3 = init_ffn_params(kp3, h3_, f3_, dtype=jnp.bfloat16)
    out3 = jax.block_until_ready(ffn_pallas(x3, *p3, tf=128))
    ref3 = ffn_reference(x3.astype(jnp.float32), *[p.astype(jnp.float32) for p in p3])
    # bf16 inputs / bf16 output with f32 accumulation: loose tolerance expected.
    assert jnp.allclose(out3.astype(jnp.float32), ref3, atol=5e-2, rtol=5e-2), \
        "mismatch vs reference (test 3, bf16)"

    print("KERNEL_OK")
</pallas_src>

<mosaic_0001>
module attributes {stable_mosaic.version = 11 : i64} {
  func.func @_ffn_kernel_f32_out(%arg0: i32, %arg1: i32, %arg2: memref<8x32xf32, #tpu.memory_space<vmem>>, %arg3: memref<32x64xf32, #tpu.memory_space<vmem>>, %arg4: memref<1x64xf32, #tpu.memory_space<vmem>>, %arg5: memref<64x32xf32, #tpu.memory_space<vmem>>, %arg6: memref<1x32xf32, #tpu.memory_space<vmem>>, %arg7: memref<8x32xf32, #tpu.memory_space<vmem>>) attributes {dimension_semantics = [#tpu.dimension_semantics<parallel>, #tpu.dimension_semantics<arbitrary>], iteration_bounds = array<i64: 2, 1>, scalar_prefetch = 0 : i64, scratch_operands = 0 : i64, tpu.core_type = #tpu.core_type<tc>, window_params = [{transform_indices = @transform_0, window_bounds = array<i64: 8, 32>}, {transform_indices = @transform_1, window_bounds = array<i64: 32, 64>}, {transform_indices = @transform_2, window_bounds = array<i64: 1, 64>}, {transform_indices = @transform_3, window_bounds = array<i64: 64, 32>}, {pipeline_mode = #tpu.pipeline_mode<synchronous>, transform_indices = @transform_4, window_bounds = array<i64: 1, 32>}, {transform_indices = @transform_5, window_bounds = array<i64: 8, 32>}]} {
    %c0_i32 = arith.constant 0 : i32
    %0 = arith.cmpi eq, %arg1, %c0_i32 : i32
    %1 = arith.extui %0 : i1 to i32
    %c0_i32_0 = arith.constant 0 : i32
    %2 = arith.cmpi ne, %1, %c0_i32_0 : i32
    scf.if %2 {
      %cst_18 = arith.constant 0.000000e+00 : f32
      %25 = vector.broadcast %cst_18 : f32 to vector<8x32xf32>
      %c0_19 = arith.constant 0 : index
      %c0_20 = arith.constant 0 : index
      %26 = vector.load %arg7[%c0_19, %c0_20] : memref<8x32xf32, #tpu.memory_space<vmem>>, vector<8x32xf32>
      tpu.vector_store %arg7[%c0_19, %c0_20], %25 {strides = array<i32>} : memref<8x32xf32, #tpu.memory_space<vmem>>, vector<8x32xf32>,
    } else {
    }
    %c0 = arith.constant 0 : index
    %c0_1 = arith.constant 0 : index
    %3 = vector.load %arg7[%c0, %c0_1] : memref<8x32xf32, #tpu.memory_space<vmem>>, vector<8x32xf32>
    %c0_2 = arith.constant 0 : index
    %c0_3 = arith.constant 0 : index
    %4 = vector.load %arg2[%c0_2, %c0_3] : memref<8x32xf32, #tpu.memory_space<vmem>>, vector<8x32xf32>
    %c0_4 = arith.constant 0 : index
    %c0_5 = arith.constant 0 : index
    %5 = vector.load %arg3[%c0_4, %c0_5] : memref<32x64xf32, #tpu.memory_space<vmem>>, vector<32x64xf32>
    %cst = arith.constant dense<0.000000e+00> : vector<8x64xf32>
    %6 = tpu.matmul %4, %5, %cst {dimension_numbers = #tpu.dot_dimension_numbers<[1], [0], [0], [1], [0, 0, 1, 1], [], []>} : vector<8x32xf32>, vector<32x64xf32>, vector<8x64xf32> -> vector<8x64xf32>
    %c0_6 = arith.constant 0 : index
    %c0_7 = arith.constant 0 : index
    %7 = vector.load %arg4[%c0_6, %c0_7] : memref<1x64xf32, #tpu.memory_space<vmem>>, vector<1x64xf32>
    %8 = vector.broadcast %7 : vector<1x64xf32> to vector<8x64xf32>
    %9 = arith.addf %6, %8 : vector<8x64xf32>
    %cst_8 = arith.constant 5.000000e-01 : f32
    %10 = vector.broadcast %cst_8 : f32 to vector<8x64xf32>
    %11 = arith.mulf %10, %9 : vector<8x64xf32>
    %cst_9 = arith.constant 0.707106769 : f32
    %12 = vector.broadcast %cst_9 : f32 to vector<8x64xf32>
    %13 = arith.mulf %9, %12 : vector<8x64xf32>
    %14 = math.erf %13 : vector<8x64xf32>
    %cst_10 = arith.constant 1.000000e+00 : f32
    %15 = vector.broadcast %cst_10 : f32 to vector<8x64xf32>
    %16 = arith.addf %15, %14 : vector<8x64xf32>
    %17 = arith.mulf %11, %16 : vector<8x64xf32>
    %c0_11 = arith.constant 0 : index
    %c0_12 = arith.constant 0 : index
    %18 = vector.load %arg5[%c0_11, %c0_12] : memref<64x32xf32, #tpu.memory_space<vmem>>, vector<64x32xf32>
    %cst_13 = arith.constant dense<0.000000e+00> : vector<8x32xf32>
    %19 = tpu.matmul %17, %18, %cst_13 {dimension_numbers = #tpu.dot_dimension_numbers<[1], [0], [0], [1], [0, 0, 1, 1], [], []>} : vector<8x64xf32>, vector<64x32xf32>, vector<8x32xf32> -> vector<8x32xf32>
    %20 = arith.addf %3, %19 : vector<8x32xf32>
    %c0_14 = arith.constant 0 : index
    %c0_15 = arith.constant 0 : index
    %21 = vector.load %arg7[%c0_14, %c0_15] : memref<8x32xf32, #tpu.memory_space<vmem>>, vector<8x32xf32>
    tpu.vector_store %arg7[%c0_14, %c0_15], %20 {strides = array<i32>} : memref<8x32xf32, #tpu.memory_space<vmem>>, vector<8x32xf32>,
    %c0_i32_16 = arith.constant 0 : i32
    %22 = arith.cmpi eq, %arg1, %c0_i32_16 : i32
    %23 = arith.extui %22 : i1 to i32
    %c0_i32_17 = arith.constant 0 : i32
    %24 = arith.cmpi ne, %23, %c0_i32_17 : i32
    scf.if %24 {
      %c0_18 = arith.constant 0 : index
      %c0_19 = arith.constant 0 : index
      %25 = vector.load %arg7[%c0_18, %c0_19] : memref<8x32xf32, #tpu.memory_space<vmem>>, vector<8x32xf32>
      %c0_20 = arith.constant 0 : index
      %c0_21 = arith.constant 0 : index
      %26 = vector.load %arg6[%c0_20, %c0_21] : memref<1x32xf32, #tpu.memory_space<vmem>>, vector<1x32xf32>
      %27 = vector.broadcast %26 : vector<1x32xf32> to vector<8x32xf32>
      %28 = arith.addf %25, %27 : vector<8x32xf32>
      %c0_22 = arith.constant 0 : index
      %c0_23 = arith.constant 0 : index
      %29 = vector.load %arg7[%c0_22, %c0_23] : memref<8x32xf32, #tpu.memory_space<vmem>>, vector<8x32xf32>
      tpu.vector_store %arg7[%c0_22, %c0_23], %28 {strides = array<i32>} : memref<8x32xf32, #tpu.memory_space<vmem>>, vector<8x32xf32>,
    } else {
    }
    return
  }
  func.func @transform_0(%arg0: i32, %arg1: i32) -> (i32, i32) {
    %c0_i32 = arith.constant 0 : i32
    %c0_i32_0 = arith.constant 0 : i32
    return %arg0, %c0_i32 : i32, i32
  }
  func.func @transform_1(%arg0: i32, %arg1: i32) -> (i32, i32) {
    %c0_i32 = arith.constant 0 : i32
    %c0_i32_0 = arith.constant 0 : i32
    return %c0_i32, %arg1 : i32, i32
  }
  func.func @transform_2(%arg0: i32, %arg1: i32) -> (i32, i32) {
    %c0_i32 = arith.constant 0 : i32
    %c0_i32_0 = arith.constant 0 : i32
    return %c0_i32, %arg1 : i32, i32
  }
  func.func @transform_3(%arg0: i32, %arg1: i32) -> (i32, i32) {
    %c0_i32 = arith.constant 0 : i32
    %c0_i32_0 = arith.constant 0 : i32
    return %arg1, %c0_i32 : i32, i32
  }
  func.func @transform_4(%arg0: i32, %arg1: i32) -> (i32, i32) {
    %c0_i32 = arith.constant 0 : i32
    %c0_i32_0 = arith.constant 0 : i32
    %c0_i32_1 = arith.constant 0 : i32
    return %c0_i32, %c0_i32_0 : i32, i32
  }
  func.func @transform_5(%arg0: i32, %arg1: i32) -> (i32, i32) {
    %c0_i32 = arith.constant 0 : i32
    %c0_i32_0 = arith.constant 0 : i32
    return %arg0, %c0_i32 : i32, i32
  }
}

</mosaic_0001>

<llo_original>
// kernel: tpu_custom_call.1
$region0: #{tpu_custom_call.1}
  #allocation0 [shape = 'u32[]', space=smem, size = 0x4, offset = 0x4, fixed_abs, tag = 'smem constant byte address 0x4 - core index']
  #allocation1 [shape = 'u32[144,128]{1,0:T(1,128)}', space=vmem, size = 0x12000, scoped, tag = 'internal scratch']
  %s0 = inlined_call_operand.vmem [shape: f32[16,32], index: 0, kind: input, shape index: {}]
  %s1 = inlined_call_operand.vmem [shape: f32[32,64], index: 1, kind: input, shape index: {}]
  %s2 = inlined_call_operand.vmem [shape: f32[1,64], index: 2, kind: input, shape index: {}]
  %s3 = inlined_call_operand.vmem [shape: f32[64,32], index: 3, kind: input, shape index: {}]
  %s4 = inlined_call_operand.vmem [shape: f32[1,32], index: 4, kind: input, shape index: {}]
  %s5 = inlined_call_operand.hbm [shape: f32[16,32], index: 5, kind: output, shape index: {}]
  %s6 = sld [smem:[#allocation0]]
  $region61: #{tpu_custom_call.1} parent=0
    _
  %s8 = ssub.s32 1, %s6
  %s9 = scalar_select 0, %s8, %s6
  $region1: #{tpu_custom_call.1} parent=0
    #allocation2 [shape = 'u8[8192]{0}', space=vmem, size = 0x2000, scoped, tag = 'output window, operand 0']
    #allocation3 [shape = 's32[2]{0}', space=sflag, size = 0x8, scoped, tag = 'scoped memory for tpu_custom_call.1']
    %10 = vsyncpa [#allocation3], 0
    %s11 = scalar_lea.sflag [#allocation3], 1
    %12 = vsyncpa %s11, 0
    loop: start=0, step=1, limit=4
    $region2: #{tpu_custom_call.1} parent=1 // loop_pre_header
      _
    $region3: #{tpu_custom_call.1} parent=1 // loop_header
      %s14 = sphi 0, %s18
      %p15 = scmp.ge.s32.totalorder %s14, 4
      %s21 = sphi 0, %s33
      %s22 = sphi 0, %s29
      %s23 = sphi 0, %s21
      %s24 = sphi 0, %s22
      %s25 = sphi 0, %s23
      %s26 = sphi 0, %s24
      %s36 = sphi 0, %s38
      %s39 = sphi 0, %s36
      %s40 = sphi 0, %s39
      %s56 = sphi 0, %s40
      %s62 = sphi 0, %s64
      %s65 = sphi 0, %s62
      %s66 = sphi 0, %s65
      %s82 = sphi 0, %s66
      %s88 = sphi 0, %s90
      %s91 = sphi 0, %s88
      %s92 = sphi 0, %s91
      %s108 = sphi 0, %s92
      %s114 = sphi 0, %s116
      %s117 = sphi 0, %s114
      %s118 = sphi 0, %s117
      %s134 = sphi 0, %s118
      %s138 = sphi 0, %s138
      %s140 = sphi 0, %s138
      %s141 = sphi 0, %s140
      %s155 = sphi 0, %s141
      %s161 = sphi 0, %s163
      %s164 = sphi 0, %s161
      %s165 = sphi 0, %s164
      %s181 = sphi 0, %s165
    $region4: #{tpu_custom_call.1} parent=1 // loop_header_branch
      %17 = sbr.rel (%p15) target = $region8
    $region5: #{tpu_custom_call.1} parent=1 // loop_body
      %s19 = ssub.s32 %s14, 1
      %s20 = ssub.s32 %s14, 2
      %s27 = sadd.s32 1, %s22
      %p28 = scmp.ge.s32.totalorder %s27, 1
      %s29 = scalar_select %p28, 0, %s27
      %s30 = sadd.s32 1, %s21
      %s31 = scalar_select %p28, %s30, %s21
      %p32 = scmp.ge.s32.totalorder %s31, 2
      %s33 = scalar_select %p32, 0, %s31
      %s34 = ssub.s32 %s21, %s33
      %p35 = scmp.eq.s32.totalorder %s34, 0
      %s37 = sadd.s32 %s36, 1
      %s38 = scalar_select %p35, %s36, %s37
      %p41 = pneg %p35
      %p42 = scmp.eq.s32.totalorder %s14, 1
      %p43 = por %p41, %p42
      %p44 = scmp.ne.s32.totalorder %s36, %s39
      %p45 = scmp.eq.s32.totalorder %s14, 0
      %p46 = por %p44, %p45
      %p47 = scmp.ne.s32.totalorder %s36, %s39
      %p48 = scmp.eq.s32.totalorder %s19, 1
      %p49 = por %p47, %p48
      %p50 = scmp.ne.s32.totalorder %s39, %s40
      %p51 = scmp.eq.s32.totalorder %s19, 0
      %p52 = por %p50, %p51
      %p53 = scmp.ne.s32.totalorder %s39, %s40
      %p54 = scmp.eq.s32.totalorder %s20, 1
      %p55 = por %p53, %p54
      %p57 = scmp.ne.s32.totalorder %s40, %s56
      %p58 = scmp.eq.s32.totalorder %s20, 0
      %p59 = por %p57, %p58
      %s60 = ssub.s32 %s22, %s29
      %p61 = scmp.eq.s32.totalorder %s60, 0
      %s63 = sadd.s32 %s62, 1
      %s64 = scalar_select %p61, %s62, %s63
      %p67 = pneg %p61
      %p68 = scmp.eq.s32.totalorder %s14, 1
      %p69 = por %p67, %p68
      %p70 = scmp.ne.s32.totalorder %s62, %s65
      %p71 = scmp.eq.s32.totalorder %s14, 0
      %p72 = por %p70, %p71
      %p73 = scmp.ne.s32.totalorder %s62, %s65
      %p74 = scmp.eq.s32.totalorder %s19, 1
      %p75 = por %p73, %p74
      %p76 = scmp.ne.s32.totalorder %s65, %s66
      %p77 = scmp.eq.s32.totalorder %s19, 0
      %p78 = por %p76, %p77
      %p79 = scmp.ne.s32.totalorder %s65, %s66
      %p80 = scmp.eq.s32.totalorder %s20, 1
      %p81 = por %p79, %p80
      %p83 = scmp.ne.s32.totalorder %s66, %s82
      %p84 = scmp.eq.s32.totalorder %s20, 0
      %p85 = por %p83, %p84
      %s86 = ssub.s32 %s22, %s29
      %p87 = scmp.eq.s32.totalorder %s86, 0
      %s89 = sadd.s32 %s88, 1
      %s90 = scalar_select %p87, %s88, %s89
      %p93 = pneg %p87
      %p94 = scmp.eq.s32.totalorder %s14, 1
      %p95 = por %p93, %p94
      %p96 = scmp.ne.s32.totalorder %s88, %s91
      %p97 = scmp.eq.s32.totalorder %s14, 0
      %p98 = por %p96, %p97
      %p99 = scmp.ne.s32.totalorder %s88, %s91
      %p100 = scmp.eq.s32.totalorder %s19, 1
      %p101 = por %p99, %p100
      %p102 = scmp.ne.s32.totalorder %s91, %s92
      %p103 = scmp.eq.s32.totalorder %s19, 0
      %p104 = por %p102, %p103
      %p105 = scmp.ne.s32.totalorder %s91, %s92
      %p106 = scmp.eq.s32.totalorder %s20, 1
      %p107 = por %p105, %p106
      %p109 = scmp.ne.s32.totalorder %s92, %s108
      %p110 = scmp.eq.s32.totalorder %s20, 0
      %p111 = por %p109, %p110
      %s112 = ssub.s32 %s22, %s29
      %p113 = scmp.eq.s32.totalorder %s112, 0
      %s115 = sadd.s32 %s114, 1
      %s116 = scalar_select %p113, %s114, %s115
      %p119 = pneg %p113
      %p120 = scmp.eq.s32.totalorder %s14, 1
      %p121 = por %p119, %p120
      %p122 = scmp.ne.s32.totalorder %s114, %s117
      %p123 = scmp.eq.s32.totalorder %s14, 0
      %p124 = por %p122, %p123
      %p125 = scmp.ne.s32.totalorder %s114, %s117
      %p126 = scmp.eq.s32.totalorder %s19, 1
      %p127 = por %p125, %p126
      %p128 = scmp.ne.s32.totalorder %s117, %s118
      %p129 = scmp.eq.s32.totalorder %s19, 0
      %p130 = por %p128, %p129
      %p131 = scmp.ne.s32.totalorder %s117, %s118
      %p132 = scmp.eq.s32.totalorder %s20, 1
      %p133 = por %p131, %p132
      %p135 = scmp.ne.s32.totalorder %s118, %s134
      %p136 = scmp.eq.s32.totalorder %s20, 0
      %p137 = por %p135, %p136
      %s139 = sadd.s32 %s138, 1
      %p142 = scmp.eq.s32.totalorder %s14, 1
      %p143 = scmp.ne.s32.totalorder %s138, %s140
      %p144 = scmp.eq.s32.totalorder %s14, 0
      %p145 = por %p143, %p144
      %p146 = scmp.ne.s32.totalorder %s138, %s140
      %p147 = scmp.eq.s32.totalorder %s19, 1
      %p148 = por %p146, %p147
      %p149 = scmp.ne.s32.totalorder %s140, %s141
      %p150 = scmp.eq.s32.totalorder %s19, 0
      %p151 = por %p149, %p150
      %p152 = scmp.ne.s32.totalorder %s140, %s141
      %p153 = scmp.eq.s32.totalorder %s20, 1
      %p154 = por %p152, %p153
      %p156 = scmp.ne.s32.totalorder %s141, %s155
      %p157 = scmp.eq.s32.totalorder %s20, 0
      %p158 = por %p156, %p157
      %s159 = ssub.s32 %s21, %s33
      %p160 = scmp.eq.s32.totalorder %s159, 0
      %s162 = sadd.s32 %s161, 1
      %s163 = scalar_select %p160, %s161, %s162
      %p166 = pneg %p160
      %p167 = scmp.eq.s32.totalorder %s14, 1
      %p168 = por %p166, %p167
      %p169 = scmp.ne.s32.totalorder %s161, %s164
      %p170 = scmp.eq.s32.totalorder %s14, 0
      %p171 = por %p169, %p170
      %p172 = scmp.ne.s32.totalorder %s161, %s164
      %p173 = scmp.eq.s32.totalorder %s19, 1
      %p174 = por %p172, %p173
      %p175 = scmp.ne.s32.totalorder %s164, %s165
      %p176 = scmp.eq.s32.totalorder %s19, 0
      %p177 = por %p175, %p176
      %p178 = scmp.ne.s32.totalorder %s164, %s165
      %p179 = scmp.eq.s32.totalorder %s20, 1
      %p180 = por %p178, %p179
      %p182 = scmp.ne.s32.totalorder %s165, %s181
      %p183 = scmp.eq.s32.totalorder %s20, 0
      %p184 = por %p182, %p183
      %p185 = scmp.le.s32.totalorder 1, %s14
      %p186 = scmp.lt.s32.totalorder %s14, 3
      %p187 = pnand %p185, %p186
      %p188 = pneg %p187
      // Predicated region
      $region9: #{tpu_custom_call.1} parent=5 // pred_check
        _
      $region10: #{tpu_custom_call.1} parent=5 // pred_check_branch
        %190 = sbr.rel (%p187) target = $region12
      $region11: #{tpu_custom_call.1} parent=5 // pred_region
        %s191 = ssub.s32 %s14, 1
        // Predicated region
        $region13: #{tpu_custom_call.1} parent=11 // pred_check
          %p192 = pneg %p78
        $region14: #{tpu_custom_call.1} parent=11 // pred_check_branch
          %194 = sbr.rel (%p192) target = $region16
        $region15: #{tpu_custom_call.1} parent=11 // pred_region
          %p195 = scmp.lt.s32.totalorder %s24, 0
          %s196 = scalar_select %p195, %s24, 0
          %s197 = smul.addr %s196, 8
          %s198 = scalar_lea.vmem %s1, %s197
        $region16: #{tpu_custom_call.1} parent=11 // pred_fallthru
          _
        // Predicated region
        $region17: #{tpu_custom_call.1} parent=11 // pred_check
          %p199 = pneg %p104
        $region18: #{tpu_custom_call.1} parent=11 // pred_check_branch
          %201 = sbr.rel (%p199) target = $region20
        $region19: #{tpu_custom_call.1} parent=11 // pred_region
          %p202 = scmp.lt.s32.totalorder %s24, 0
          %s203 = scalar_select %p202, %s24, 0
          %s204 = scalar_lea.vmem %s2, %s203
        $region20: #{tpu_custom_call.1} parent=11 // pred_fallthru
          _
        // Predicated region
        $region21: #{tpu_custom_call.1} parent=11 // pred_check
          %p205 = pneg %p130
        $region22: #{tpu_custom_call.1} parent=11 // pred_check_branch
          %207 = sbr.rel (%p205) target = $region24
        $region23: #{tpu_custom_call.1} parent=11 // pred_region
          %s208 = smul.u32 8, %s24
          %p209 = scmp.lt.s32.totalorder %s208, 7
          %s210 = scalar_select %p209, %s208, 7
          %s211 = smul.addr %s210, 8
          %s212 = scalar_lea.vmem %s3, %s211
          %s213 = smul.u32 8, %s24
        $region24: #{tpu_custom_call.1} parent=11 // pred_fallthru
          _
        // Predicated region
        $region25: #{tpu_custom_call.1} parent=11 // pred_check
          %p214 = pneg %p151
        $region26: #{tpu_custom_call.1} parent=11 // pred_check_branch
          %216 = sbr.rel (%p214) target = $region28
        $region27: #{tpu_custom_call.1} parent=11 // pred_region
          _
        $region28: #{tpu_custom_call.1} parent=11 // pred_fallthru
          _
      $region12: #{tpu_custom_call.1} parent=5 // pred_fallthru
        _
      %p217 = scmp.lt.s32.totalorder %s14, 2
      // Predicated region
      $region29: #{tpu_custom_call.1} parent=5 // pred_check
        %p218 = pneg %p217
      $region30: #{tpu_custom_call.1} parent=5 // pred_check_branch
        %220 = sbr.rel (%p218) target = $region32
      $region31: #{tpu_custom_call.1} parent=5 // pred_region
        // Predicated region
        $region33: #{tpu_custom_call.1} parent=31 // pred_check
          %p221 = pneg %p46
        $region34: #{tpu_custom_call.1} parent=31 // pred_check_branch
          %223 = sbr.rel (%p221) target = $region36
        $region35: #{tpu_custom_call.1} parent=31 // pred_region
          %p224 = scmp.lt.s32.totalorder %s21, 1
          %s225 = scalar_select %p224, %s21, 1
          %s226 = smul.addr %s225, 8
          %s227 = scalar_lea.vmem %s0, %s226
        $region36: #{tpu_custom_call.1} parent=31 // pred_fallthru
          _
      $region32: #{tpu_custom_call.1} parent=5 // pred_fallthru
        _
      %p228 = scmp.le.s32.totalorder 1, %s14
      %p229 = scmp.lt.s32.totalorder %s14, 3
      %p230 = pnand %p228, %p229
      %p231 = pneg %p230
      // Predicated region
      $region37: #{tpu_custom_call.1} parent=5 // pred_check
        _
      $region38: #{tpu_custom_call.1} parent=5 // pred_check_branch
        %233 = sbr.rel (%p230) target = $region40
      $region39: #{tpu_custom_call.1} parent=5 // pred_region
        %s234 = ssub.s32 %s14, 1
        %p235 = scmp.lt.s32.totalorder %s23, 1
        %s236 = scalar_select %p235, %s23, 1
        %s237 = smul.addr %s236, 8
        %s238 = scalar_lea.vmem %s0, %s237
        %p239 = pneg %p52
        %p240 = pneg %p49
        %p241 = scmp.lt.s32.totalorder %s24, 0
        %s242 = scalar_select %p241, %s24, 0
        %s243 = smul.addr %s242, 8
        %s244 = scalar_lea.vmem %s1, %s243
        %p245 = pneg %p78
        %p246 = pneg %p75
        %p247 = scmp.lt.s32.totalorder %s24, 0
        %s248 = scalar_select %p247, %s24, 0
        %s249 = scalar_lea.vmem %s2, %s248
        %p250 = pneg %p104
        %p251 = pneg %p101
        %s252 = smul.u32 8, %s24
        %p253 = scmp.lt.s32.totalorder %s252, 7
        %s254 = scalar_select %p253, %s252, 7
        %s255 = smul.addr %s254, 8
        %s256 = scalar_lea.vmem %s3, %s255
        %p257 = pneg %p130
        %p258 = pneg %p127
        %p259 = pneg %p151
        %p260 = pneg %p148
        %p261 = pneg %p177
        %p262 = pneg %p174
        %s263 = sand.u32 %s164, 1
        %s264 = scalar_lea.sflag [#allocation3], %s263
        %s265 = sand.u32 %s164, 1
        %s266 = smul.addr %s265, 8
        %s267 = scalar_lea.vmem [#allocation2], %s266
        %p268 = scmp.lt.s32.totalorder %s23, 1
        %s269 = scalar_select %p268, %s23, 1
        %s270 = smul.addr %s269, 8
        %s271 = scalar_lea.vmem %s0, %s270
        %p272 = scmp.lt.s32.totalorder %s24, 0
        %s273 = scalar_select %p272, %s24, 0
        %s274 = smul.addr %s273, 8
        %s275 = scalar_lea.vmem %s1, %s274
        %p276 = scmp.lt.s32.totalorder %s24, 0
        %s277 = scalar_select %p276, %s24, 0
        %s278 = scalar_lea.vmem %s2, %s277
        %s279 = smul.u32 8, %s24
        %p280 = scmp.lt.s32.totalorder %s279, 7
        %s281 = scalar_select %p280, %s279, 7
        %s282 = smul.addr %s281, 8
        %s283 = scalar_lea.vmem %s3, %s282
        %s284 = smul.u32 8, %s24
        %p285 = scmp.eq.s32.totalorder %s24, 0
        // Predicated region
        $region41: #{tpu_custom_call.1} parent=39 // pred_check
          %p286 = pneg %p285
        $region42: #{tpu_custom_call.1} parent=39 // pred_check_branch
          %288 = sbr.rel (%p286) target = $region44
        $region43: #{tpu_custom_call.1} parent=39 // pred_region
          %vm289 = vcmask 261120
          %290 = vst.msk [vmem:[%s267] sm:$0xff] %vm289, 0.0
        $region44: #{tpu_custom_call.1} parent=39 // pred_fallthru
          _
        %v291 = vld [vmem:[%s267] sm:$0xff]
        %v292 = vld [vmem:[%s271] sm:$0xff]
        %v293 = vld [vmem:[%s275] sm:$0xff]
        %v294 = vld [vmem:[%s275 + $0x8] sm:$0xff]
        %v295 = vld [vmem:[%s275 + $0x10] sm:$0xff]
        %v296 = vld [vmem:[%s275 + $0x18] sm:$0xff]
        %v297 = vld [vmem:[%s278] sm:$0x1]
        %v299 = vlaneseq
        %v300 = vshrl.u32 %v299, 7
        %v301 = vsub.s32 0, %v300
        %v302 = vrot.slane %v297, %v301
        %vm304 = vcmask 261120
        %v306 = vsel %vm304, %v292, 0
        %308 = vmatprep.subr.mxu0 0.0
        %309 = vmatpush1.msra.mxu0 %v293
        %310 = vmatprep.subr.mxu0 0.0
        %311 = vmatpush1.msra.mxu0 %v294
        %312 = vmatprep.subr.mxu0 0.0
        %313 = vmatpush1.msra.mxu0 %v295
        %314 = vmatprep.subr.mxu0 0.0
        %315 = vmatpush1.msra.mxu0 %v296
        %316 = vmatprep.subr.mxu0 0.0
        %317 = vmatpush1.msra.mxu0 0.0
        %318 = vmatprep.subr.mxu0 0.0
        %319 = vmatpush1.msra.mxu0 0.0
        %320 = vmatprep.subr.mxu0 0.0
        %321 = vmatpush1.msra.mxu0 0.0
        %322 = vmatprep.subr.mxu0 0.0
        %323 = vmatpush1.msra.mxu0 0.0
        %324 = vmatprep.subr.mxu0 0.0
        %325 = vmatpush1.msra.mxu0 0.0
        %326 = vmatprep.subr.mxu0 0.0
        %327 = vmatpush1.msra.mxu0 0.0
        %328 = vmatprep.subr.mxu0 0.0
        %329 = vmatpush1.msra.mxu0 0.0
        %330 = vmatprep.subr.mxu0 0.0
        %331 = vmatpush1.msra.mxu0 0.0
        %332 = vmatprep.subr.mxu0 0.0
        %333 = vmatpush1.msra.mxu0 0.0
        %334 = vmatprep.subr.mxu0 0.0
        %335 = vmatpush1.msra.mxu0 0.0
        %336 = vmatprep.subr.mxu0 0.0
        %337 = vmatpush1.msra.mxu0 0.0
        %338 = vmatprep.subr.mxu0 0.0
        %339 = vmatpush1.msra.mxu0 0.0
        %340 = vmatprep.subr.mxu0 0.0
        %341 = vmatpush1.msra.mxu0 0.0
        %342 = vmatprep.subr.mxu0 0.0
        %343 = vmatpush1.msra.mxu0 0.0
        %344 = vmatprep.subr.mxu0 0.0
        %345 = vmatpush1.msra.mxu0 0.0
        %346 = vmatprep.subr.mxu0 0.0
        %347 = vmatpush1.msra.mxu0 0.0
        %348 = vmatprep.subr.mxu0 0.0
        %349 = vmatpush1.msra.mxu0 0.0
        %350 = vmatprep.subr.mxu0 0.0
        %351 = vmatpush1.msra.mxu0 0.0
        %352 = vmatprep.subr.mxu0 0.0
        %353 = vmatpush1.msra.mxu0 0.0
        %354 = vmatprep.subr.mxu0 0.0
        %355 = vmatpush1.msra.mxu0 0.0
        %356 = vmatprep.subr.mxu0 0.0
        %357 = vmatpush1.msra.mxu0 0.0
        %358 = vmatprep.subr.mxu0 0.0
        %359 = vmatpush1.msra.mxu0 0.0
        %360 = vmatprep.subr.mxu0 0.0
        %361 = vmatpush1.msra.mxu0 0.0
        %362 = vmatprep.subr.mxu0 0.0
        %363 = vmatpush1.msra.mxu0 0.0
        %364 = vmatprep.subr.mxu0 0.0
        %365 = vmatpush1.msra.mxu0 0.0
        %366 = vmatprep.subr.mxu0 0.0
        %367 = vmatpush1.msra.mxu0 0.0
        %368 = vmatprep.subr.mxu0 0.0
        %369 = vmatpush1.msra.mxu0 0.0
        %370 = vmatprep.subr.mxu0 0.0
        %371 = vmatpush1.msra.mxu0 0.0
        %372 = vmatprep.mubr.f32.mxu0 0.0
        %373 = vmatmul.mubr.f32.gmra.mrb[0].mxu0 %v306
        %v374 = vpop.f32.mrb[0].mxu0
        %v375 = vadd.f32 %v302, %v374
        %v376 = vpop.f32.mrb[0].mxu0
        %377 = vdwg.mxu0
        %v378 = vmul.f32 %v375, 0.5
        %v379 = vmul.f32 %v375, 0.70710677
        %v380 = verf.f32.pop %v379
        %v381 = vadd.f32 %v380, 1.0
        %v382 = vmul.f32 %v378, %v381
        %v383 = vld [vmem:[%s283] sm:$0xff]
        %v384 = vld [vmem:[%s283 + $0x8] sm:$0xff]
        %v385 = vld [vmem:[%s283 + $0x10] sm:$0xff]
        %v386 = vld [vmem:[%s283 + $0x18] sm:$0xff]
        %v387 = vld [vmem:[%s283 + $0x20] sm:$0xff]
        %v388 = vld [vmem:[%s283 + $0x28] sm:$0xff]
        %v389 = vld [vmem:[%s283 + $0x30] sm:$0xff]
        %v390 = vld [vmem:[%s283 + $0x38] sm:$0xff]
        %vm391 = vcmask 523264
        %v393 = vsel %vm391, %v382, 0
        %395 = vmatprep.subr.mxu0 0.0
        %396 = vmatpush1.msra.mxu0 %v383
        %397 = vmatprep.subr.mxu0 0.0
        %398 = vmatpush1.msra.mxu0 %v384
        %399 = vmatprep.subr.mxu0 0.0
        %400 = vmatpush1.msra.mxu0 %v385
        %401 = vmatprep.subr.mxu0 0.0
        %402 = vmatpush1.msra.mxu0 %v386
        %403 = vmatprep.subr.mxu0 0.0
        %404 = vmatpush1.msra.mxu0 %v387
        %405 = vmatprep.subr.mxu0 0.0
        %406 = vmatpush1.msra.mxu0 %v388
        %407 = vmatprep.subr.mxu0 0.0
        %408 = vmatpush1.msra.mxu0 %v389
        %409 = vmatprep.subr.mxu0 0.0
        %410 = vmatpush1.msra.mxu0 %v390
        %411 = vmatprep.subr.mxu0 0.0
        %412 = vmatpush1.msra.mxu0 0.0
        %413 = vmatprep.subr.mxu0 0.0
        %414 = vmatpush1.msra.mxu0 0.0
        %415 = vmatprep.subr.mxu0 0.0
        %416 = vmatpush1.msra.mxu0 0.0
        %417 = vmatprep.subr.mxu0 0.0
        %418 = vmatpush1.msra.mxu0 0.0
        %419 = vmatprep.subr.mxu0 0.0
        %420 = vmatpush1.msra.mxu0 0.0
        %421 = vmatprep.subr.mxu0 0.0
        %422 = vmatpush1.msra.mxu0 0.0
        %423 = vmatprep.subr.mxu0 0.0
        %424 = vmatpush1.msra.mxu0 0.0
        %425 = vmatprep.subr.mxu0 0.0
        %426 = vmatpush1.msra.mxu0 0.0
        %427 = vmatprep.subr.mxu0 0.0
        %428 = vmatpush1.msra.mxu0 0.0
        %429 = vmatprep.subr.mxu0 0.0
        %430 = vmatpush1.msra.mxu0 0.0
        %431 = vmatprep.subr.mxu0 0.0
        %432 = vmatpush1.msra.mxu0 0.0
        %433 = vmatprep.subr.mxu0 0.0
        %434 = vmatpush1.msra.mxu0 0.0
        %435 = vmatprep.subr.mxu0 0.0
        %436 = vmatpush1.msra.mxu0 0.0
        %437 = vmatprep.subr.mxu0 0.0
        %438 = vmatpush1.msra.mxu0 0.0
        %439 = vmatprep.subr.mxu0 0.0
        %440 = vmatpush1.msra.mxu0 0.0
        %441 = vmatprep.subr.mxu0 0.0
        %442 = vmatpush1.msra.mxu0 0.0
        %443 = vmatprep.subr.mxu0 0.0
        %444 = vmatpush1.msra.mxu0 0.0
        %445 = vmatprep.subr.mxu0 0.0
        %446 = vmatpush1.msra.mxu0 0.0
        %447 = vmatprep.subr.mxu0 0.0
        %448 = vmatpush1.msra.mxu0 0.0
        %449 = vmatprep.subr.mxu0 0.0
        %450 = vmatpush1.msra.mxu0 0.0
        %451 = vmatprep.subr.mxu0 0.0
        %452 = vmatpush1.msra.mxu0 0.0
        %453 = vmatprep.subr.mxu0 0.0
        %454 = vmatpush1.msra.mxu0 0.0
        %455 = vmatprep.subr.mxu0 0.0
        %456 = vmatpush1.msra.mxu0 0.0
        %457 = vmatprep.subr.mxu0 0.0
        %458 = vmatpush1.msra.mxu0 0.0
        %459 = vmatprep.mubr.f32.mxu0 0.0
        %460 = vmatmul.mubr.f32.gmra.mrb[0].mxu0 %v393
        %v461 = vpop.f32.mrb[0].mxu0
        %v462 = vadd.f32 0.0, %v461
        %v463 = vpop.f32.mrb[0].mxu0
        %464 = vdwg.mxu0
        %v465 = vadd.f32 %v291, %v462
        %466 = vst.msk [vmem:[%s267] sm:$0xff] %vm304, %v465
        // Predicated region
        $region45: #{tpu_custom_call.1} parent=39 // pred_check
          %p467 = pneg %p285
        $region46: #{tpu_custom_call.1} parent=39 // pred_check_branch
          %469 = sbr.rel (%p467) target = $region48
        $region47: #{tpu_custom_call.1} parent=39 // pred_region
          %v470 = vld [vmem:[%s267] sm:$0xff]
          %v471 = vld [vmem:[%s4] sm:$0x1]
          %v473 = vlaneseq
          %v474 = vshrl.u32 %v473, 7
          %v475 = vsub.s32 0, %v474
          %v476 = vrot.slane %v471, %v475
          %v478 = vadd.f32 %v470, %v476
          %479 = vst.msk [vmem:[%s267] sm:$0xff] %vm304, %v478
        $region48: #{tpu_custom_call.1} parent=39 // pred_fallthru
          _
        %s480 = sand.u32 %s164, 1
        %s481 = scalar_lea.sflag [#allocation3], %s480
        %s482 = sand.u32 %s164, 1
        %s483 = smul.addr %s482, 8
        %s484 = scalar_lea.vmem [#allocation2], %s483
        // Predicated region
        $region49: #{tpu_custom_call.1} parent=39 // pred_check
          %p485 = pneg %p174
        $region50: #{tpu_custom_call.1} parent=39 // pred_check_branch
          %487 = sbr.rel (%p485) target = $region52
        $region51: #{tpu_custom_call.1} parent=39 // pred_region
          %s489 = ssub.s32 128, 128
          %490 = vsyncadd %s481, %s489
          %s491 = smul.addr %s23, 128
          %s492 = scalar_lea.hbm %s5, %s491
          %s494 = sshll.u32 %s484, 4
          %s495 = int_to_ptr.vmem [resolvable:$true] %s494
          %497 = dma.vmem_to_hbm [thread:$0]  %s495, 128, %s492, %s481
        $region52: #{tpu_custom_call.1} parent=39 // pred_fallthru
          _
      $region40: #{tpu_custom_call.1} parent=5 // pred_fallthru
        _
      %p498 = scmp.le.s32.totalorder 2, %s14
      // Predicated region
      $region53: #{tpu_custom_call.1} parent=5 // pred_check
        %p499 = pneg %p498
      $region54: #{tpu_custom_call.1} parent=5 // pred_check_branch
        %501 = sbr.rel (%p499) target = $region56
      $region55: #{tpu_custom_call.1} parent=5 // pred_region
        %s502 = ssub.s32 %s14, 2
        // Predicated region
        $region57: #{tpu_custom_call.1} parent=55 // pred_check
          %p503 = pneg %p180
        $region58: #{tpu_custom_call.1} parent=55 // pred_check_branch
          %505 = sbr.rel (%p503) target = $region60
        $region59: #{tpu_custom_call.1} parent=55 // pred_region
          %s506 = sand.u32 %s165, 1
          %s507 = scalar_lea.sflag [#allocation3], %s506
          %s508 = sand.u32 %s165, 1
          %s509 = smul.addr %s508, 8
          %s510 = scalar_lea.vmem [#allocation2], %s509
          %511 = dma.done %s507, 128
        $region60: #{tpu_custom_call.1} parent=55 // pred_fallthru
          _
      $region56: #{tpu_custom_call.1} parent=5 // pred_fallthru
        _
    $region6: #{tpu_custom_call.1} parent=1 // loop_footer
      %s18 = sadd.s32 1, %s14
    $region7: #{tpu_custom_call.1} parent=1 // loop_footer_branch
      %13 = sbr.rel target = $region3
    $region8: #{tpu_custom_call.1} parent=1 // loop_exit
      _
    %512 = vsyncpa [#allocation3], 1
    %s513 = scalar_lea.sflag [#allocation3], 1
    %514 = vsyncpa %s513, 1

</llo_original>
